<compile_context>
chip_gen: v5e
topology: v5e:2x2
jax: 0.10.0
libtpu: 0.0.40
codegen_flags: <defaults>
</compile_context>

<pallas_src>
import jax
import jax.numpy as jnp
from jax.experimental import pallas as pl
from jax.experimental.pallas import tpu as pltpu


# ----------------------------- helpers --------------------------------------


def _round_up(n, m):
    return ((n + m - 1) // m) * m


def _pad_rows(a, rows):
    pad = rows - a.shape[0]
    if pad == 0:
        return a
    widths = [(0, pad)] + [(0, 0)] * (a.ndim - 1)
    return jnp.pad(a, widths)


# ----------------------------- Pallas kernels -------------------------------


def _concat_kernel(i1_ref, i2_ref, ea_ref, x_ref,
                   w1a_ref, w1b_ref, w1c_ref, b1_ref, w2_ref, b2_ref, o_ref):
    # i1/i2: (TE, 1) int32   ea: (TE, H)   x: (N, H) resident in VMEM
    # w1a/w1b/w1c: (H, 3H)   b1: (1, 3H)   w2: (3H, H)   b2: (1, H)
    te = i1_ref.shape[0]
    n = x_ref.shape[0]
    lane_ids = jax.lax.broadcasted_iota(jnp.int32, (te, n), 1)
    oh1 = (lane_ids == i1_ref[...]).astype(jnp.float32)
    oh2 = (lane_ids == i2_ref[...]).astype(jnp.float32)
    x_tbl = x_ref[...]
    # Fused gather on the MXU (HBM-bound regime -> MXU flops are free).
    x1 = jnp.dot(oh1, x_tbl, preferred_element_type=jnp.float32)
    x2 = jnp.dot(oh2, x_tbl, preferred_element_type=jnp.float32)
    # First linear layer without materializing concat([x1, x2, ea]).
    h = (jnp.dot(x1, w1a_ref[...], preferred_element_type=jnp.float32)
         + jnp.dot(x2, w1b_ref[...], preferred_element_type=jnp.float32)
         + jnp.dot(ea_ref[...], w1c_ref[...], preferred_element_type=jnp.float32)
         + b1_ref[...])
    h = jnp.maximum(h, 0.0)  # ReLU
    out = jnp.dot(h, w2_ref[...], preferred_element_type=jnp.float32) + b2_ref[...]
    o_ref[...] = out.astype(o_ref.dtype)


def _add_kernel(i1_ref, i2_ref, ea_ref, x_ref, o_ref):
    te = i1_ref.shape[0]
    n = x_ref.shape[0]
    lane_ids = jax.lax.broadcasted_iota(jnp.int32, (te, n), 1)
    # Sum of the two one-hots handles self-loops (i1 == i2) correctly.
    oh = ((lane_ids == i1_ref[...]).astype(jnp.float32)
          + (lane_ids == i2_ref[...]).astype(jnp.float32))
    gathered = jnp.dot(oh, x_ref[...], preferred_element_type=jnp.float32)
    o_ref[...] = (gathered + ea_ref[...]).astype(o_ref.dtype)


# ----------------------------- pallas_call wrappers --------------------------


def _concat_pallas(i1, i2, ea, x, w1a, w1b, w1c, b1, w2, b2, *, tile_e):
    epad, h = ea.shape
    n = x.shape[0]
    f3 = w1a.shape[1]
    grid = (epad // tile_e,)

    flops = epad * (4 * n * h + 24 * h * h)
    bytes_accessed = 4 * (2 * epad * h          # ea read + out write
                          + 2 * epad            # int32 edge indices
                          + n * h               # node table (resident)
                          + 3 * h * f3 + f3     # W1 slabs + b1
                          + f3 * h + h)         # W2 + b2

    return pl.pallas_call(
        _concat_kernel,
        out_shape=jax.ShapeDtypeStruct((epad, h), jnp.float32),
        grid_spec=pltpu.PrefetchScalarGridSpec(
            num_scalar_prefetch=0,
            grid=grid,
            in_specs=[
                pl.BlockSpec((tile_e, 1), lambda i: (i, 0)),   # i1
                pl.BlockSpec((tile_e, 1), lambda i: (i, 0)),   # i2
                pl.BlockSpec((tile_e, h), lambda i: (i, 0)),   # edge_attr
                pl.BlockSpec((n, h), lambda i: (0, 0)),        # node table (resident)
                pl.BlockSpec((h, f3), lambda i: (0, 0)),       # W1a
                pl.BlockSpec((h, f3), lambda i: (0, 0)),       # W1b
                pl.BlockSpec((h, f3), lambda i: (0, 0)),       # W1c
                pl.BlockSpec((1, f3), lambda i: (0, 0)),       # b1
                pl.BlockSpec((f3, h), lambda i: (0, 0)),       # W2
                pl.BlockSpec((1, h), lambda i: (0, 0)),        # b2
            ],
            out_specs=pl.BlockSpec((tile_e, h), lambda i: (i, 0)),
        ),
        compiler_params=pltpu.CompilerParams(
            dimension_semantics=("parallel",),
            vmem_limit_bytes=64 * 1024 * 1024,
        ),
        cost_estimate=pl.CostEstimate(
            flops=int(flops), transcendentals=0,
            bytes_accessed=int(bytes_accessed)),
    )(i1, i2, ea, x, w1a, w1b, w1c, b1, w2, b2)


def _add_pallas(i1, i2, ea, x, *, tile_e):
    epad, h = ea.shape
    n = x.shape[0]
    grid = (epad // tile_e,)

    flops = epad * (2 * n * h + h)
    bytes_accessed = 4 * (2 * epad * h + 2 * epad + n * h)

    return pl.pallas_call(
        _add_kernel,
        out_shape=jax.ShapeDtypeStruct((epad, h), jnp.float32),
        grid_spec=pltpu.PrefetchScalarGridSpec(
            num_scalar_prefetch=0,
            grid=grid,
            in_specs=[
                pl.BlockSpec((tile_e, 1), lambda i: (i, 0)),
                pl.BlockSpec((tile_e, 1), lambda i: (i, 0)),
                pl.BlockSpec((tile_e, h), lambda i: (i, 0)),
                pl.BlockSpec((n, h), lambda i: (0, 0)),
            ],
            out_specs=pl.BlockSpec((tile_e, h), lambda i: (i, 0)),
        ),
        compiler_params=pltpu.CompilerParams(
            dimension_semantics=("parallel",),
            vmem_limit_bytes=64 * 1024 * 1024,
        ),
        cost_estimate=pl.CostEstimate(
            flops=int(flops), transcendentals=0,
            bytes_accessed=int(bytes_accessed)),
    )(i1, i2, ea, x)


# --------------------------- plain-JAX glue ----------------------------------


def cumsum_pad0(num):
    # ret[0] = 0; ret[1:] = cumsum(num[:-1])
    return jnp.concatenate(
        [jnp.zeros((1,), dtype=num.dtype), jnp.cumsum(num[:-1], axis=0)]
    )


def num2batch(num_edge, total_edges):
    # total_edges must be static (== E); mirrors the PyTorch scatter + cumsum.
    # TODO(synk): graphs with 0 edges collapse duplicate offsets (same edge
    #             case exists in the scatter-based PyTorch original).
    offset = cumsum_pad0(num_edge)
    indicator = jnp.zeros((total_edges,), dtype=offset.dtype)
    indicator = indicator.at[offset].set(1)
    indicator = indicator.at[0].set(0)
    return jnp.cumsum(indicator, axis=0)


class Tuple2Encoder:
    """JAX/Pallas re-implementation of graphgps Tuple2Encoder."""

    def __init__(self, hid_dim, mode="add", key=None):
        assert mode in ("add", "concat")
        self.mode = mode
        self.hid_dim = hid_dim
        if key is None:
            key = jax.random.PRNGKey(0)
        k1, k2, k3, k4 = jax.random.split(key, 4)
        f3 = hid_dim * 3
        lim1 = 1.0 / jnp.sqrt(f3)
        # Full W1 kept for the reference; the kernel consumes the row-split.
        self.w1 = jax.random.uniform(k1, (f3, f3), jnp.float32, -lim1, lim1)
        self.b1 = jax.random.uniform(k2, (1, f3), jnp.float32, -lim1, lim1)
        self.w2 = jax.random.uniform(k3, (f3, hid_dim), jnp.float32, -lim1, lim1)
        self.b2 = jax.random.uniform(k4, (1, hid_dim), jnp.float32, -lim1, lim1)
        self.w1a = self.w1[:hid_dim]
        self.w1b = self.w1[hid_dim:2 * hid_dim]
        self.w1c = self.w1[2 * hid_dim:]

    def __call__(self, batch, *, max_tile_e=512):
        x = batch["x"].astype(jnp.float32)
        edge_index = batch["edge_index"].astype(jnp.int32)
        edge_attr = batch["edge_attr"].astype(jnp.float32)
        E = edge_attr.shape[0]

        # Tile selection: largest multiple of 8 up to max_tile_e; pad E to a
        # tile multiple (index 0 is a valid node; padded rows are sliced off).
        tile_e = min(max_tile_e, _round_up(E, 8))
        epad = _round_up(E, tile_e)
        i1 = _pad_rows(edge_index[0][:, None], epad)
        i2 = _pad_rows(edge_index[1][:, None], epad)
        ea = _pad_rows(edge_attr, epad)

        if self.mode == "concat":
            new_x = _concat_pallas(i1, i2, ea, x,
                                   self.w1a, self.w1b, self.w1c, self.b1,
                                   self.w2, self.b2, tile_e=tile_e)
        else:
            new_x = _add_pallas(i1, i2, ea, x, tile_e=tile_e)
        new_x = new_x[:E]

        out = dict(batch)
        out["x"] = new_x
        out["batch_original"] = batch["batch"]
        out["batch_tuple"] = num2batch(batch["num_edge_per_graph"], E)
        out["batch"] = out["batch_tuple"]
        return out


# ------------------------------- reference -----------------------------------


def _reference(batch, enc):
    x1 = batch["x"][batch["edge_index"][0]]
    x2 = batch["x"][batch["edge_index"][1]]
    if enc.mode == "concat":
        xc = jnp.concatenate([x1, x2, batch["edge_attr"]], axis=1)
        h = jnp.maximum(xc @ enc.w1 + enc.b1, 0.0)
        return h @ enc.w2 + enc.b2
    return x1 + x2 + batch["edge_attr"]


# --------------------------------- main ---------------------------------------


if __name__ == "__main__":
    key = jax.random.PRNGKey(0)
    kx, ke, ka, kp1, kp2 = jax.random.split(key, 5)

    N, H, E, G = 16, 32, 64, 2

    x = jax.random.normal(kx, (N, H), jnp.float32)
    edge_index = jax.random.randint(ke, (2, E), 0, N, dtype=jnp.int32)
    edge_attr = jax.random.normal(ka, (E, H), jnp.float32)
    node_batch = jnp.repeat(jnp.arange(G, dtype=jnp.int32), N // G)
    num_edge_per_graph = jnp.array([40, 24], dtype=jnp.int32)  # sums to E

    batch = {
        "x": x,
        "edge_index": edge_index,
        "edge_attr": edge_attr,
        "batch": node_batch,
        "num_edge_per_graph": num_edge_per_graph,
    }

    ok = True
    for mode, kp in (("add", kp1), ("concat", kp2)):
        enc = Tuple2Encoder(H, mode=mode, key=kp)
        out = enc(batch, max_tile_e=512)
        jax.block_until_ready(out["x"])
        ref = _reference(batch, enc)
        ok &= bool(jnp.allclose(out["x"], ref, atol=1e-3, rtol=1e-3))
        # sanity on batch_tuple bookkeeping
        ref_bt = jnp.repeat(jnp.arange(G, dtype=jnp.int32), num_edge_per_graph,
                            total_repeat_length=E)
        ok &= bool(jnp.array_equal(out["batch_tuple"].astype(jnp.int32), ref_bt))

    if ok:
        print("KERNEL_OK")
    else:
        raise SystemExit("mismatch vs reference")
</pallas_src>

<mosaic_0001>
module attributes {stable_mosaic.version = 11 : i64} {
  func.func @_add_kernel(%arg0: i32, %arg1: memref<64x1xi32, #tpu.memory_space<vmem>>, %arg2: memref<64x1xi32, #tpu.memory_space<vmem>>, %arg3: memref<64x32xf32, #tpu.memory_space<vmem>>, %arg4: memref<16x32xf32, #tpu.memory_space<vmem>>, %arg5: memref<64x32xf32, #tpu.memory_space<vmem>>) attributes {dimension_semantics = [#tpu.dimension_semantics<parallel>], iteration_bounds = array<i64: 1>, scalar_prefetch = 0 : i64, scratch_operands = 0 : i64, tpu.core_type = #tpu.core_type<tc>, window_params = [{transform_indices = @transform_0, window_bounds = array<i64: 64, 1>}, {transform_indices = @transform_1, window_bounds = array<i64: 64, 1>}, {transform_indices = @transform_2, window_bounds = array<i64: 64, 32>}, {pipeline_mode = #tpu.pipeline_mode<synchronous>, transform_indices = @transform_3, window_bounds = array<i64: 16, 32>}, {transform_indices = @transform_4, window_bounds = array<i64: 64, 32>}]} {
    %0 = tpu.iota {dimensions = array<i32: 1>} : vector<64x16xi32>
    %c0 = arith.constant 0 : index
    %c0_0 = arith.constant 0 : index
    %1 = vector.load %arg1[%c0, %c0_0] : memref<64x1xi32, #tpu.memory_space<vmem>>, vector<64x1xi32>
    %2 = vector.broadcast %1 : vector<64x1xi32> to vector<64x16xi32>
    %3 = arith.cmpi eq, %0, %2 : vector<64x16xi32>
    %4 = arith.extui %3 : vector<64x16xi1> to vector<64x16xi32>
    %5 = arith.sitofp %4 : vector<64x16xi32> to vector<64x16xf32>
    %c0_1 = arith.constant 0 : index
    %c0_2 = arith.constant 0 : index
    %6 = vector.load %arg2[%c0_1, %c0_2] : memref<64x1xi32, #tpu.memory_space<vmem>>, vector<64x1xi32>
    %7 = vector.broadcast %6 : vector<64x1xi32> to vector<64x16xi32>
    %8 = arith.cmpi eq, %0, %7 : vector<64x16xi32>
    %9 = arith.extui %8 : vector<64x16xi1> to vector<64x16xi32>
    %10 = arith.sitofp %9 : vector<64x16xi32> to vector<64x16xf32>
    %11 = arith.addf %5, %10 : vector<64x16xf32>
    %c0_3 = arith.constant 0 : index
    %c0_4 = arith.constant 0 : index
    %12 = vector.load %arg4[%c0_3, %c0_4] : memref<16x32xf32, #tpu.memory_space<vmem>>, vector<16x32xf32>
    %cst = arith.constant dense<0.000000e+00> : vector<64x32xf32>
    %13 = tpu.matmul %11, %12, %cst {dimension_numbers = #tpu.dot_dimension_numbers<[1], [0], [0], [1], [0, 0, 1, 1], [], []>} : vector<64x16xf32>, vector<16x32xf32>, vector<64x32xf32> -> vector<64x32xf32>
    %c0_5 = arith.constant 0 : index
    %c0_6 = arith.constant 0 : index
    %14 = vector.load %arg3[%c0_5, %c0_6] : memref<64x32xf32, #tpu.memory_space<vmem>>, vector<64x32xf32>
    %15 = arith.addf %13, %14 : vector<64x32xf32>
    %c0_7 = arith.constant 0 : index
    %c0_8 = arith.constant 0 : index
    %16 = vector.load %arg5[%c0_7, %c0_8] : memref<64x32xf32, #tpu.memory_space<vmem>>, vector<64x32xf32>
    tpu.vector_store %arg5[%c0_7, %c0_8], %15 {strides = array<i32>} : memref<64x32xf32, #tpu.memory_space<vmem>>, vector<64x32xf32>,
    return
  }
  func.func @transform_0(%arg0: i32) -> (i32, i32) {
    %c0_i32 = arith.constant 0 : i32
    %c0_i32_0 = arith.constant 0 : i32
    return %arg0, %c0_i32 : i32, i32
  }
  func.func @transform_1(%arg0: i32) -> (i32, i32) {
    %c0_i32 = arith.constant 0 : i32
    %c0_i32_0 = arith.constant 0 : i32
    return %arg0, %c0_i32 : i32, i32
  }
  func.func @transform_2(%arg0: i32) -> (i32, i32) {
    %c0_i32 = arith.constant 0 : i32
    %c0_i32_0 = arith.constant 0 : i32
    return %arg0, %c0_i32 : i32, i32
  }
  func.func @transform_3(%arg0: i32) -> (i32, i32) {
    %c0_i32 = arith.constant 0 : i32
    %c0_i32_0 = arith.constant 0 : i32
    %c0_i32_1 = arith.constant 0 : i32
    return %c0_i32, %c0_i32_0 : i32, i32
  }
  func.func @transform_4(%arg0: i32) -> (i32, i32) {
    %c0_i32 = arith.constant 0 : i32
    %c0_i32_0 = arith.constant 0 : i32
    return %arg0, %c0_i32 : i32, i32
  }
}

</mosaic_0001>

<llo_original>
// kernel: tpu_custom_call.1
$region0: #{tpu_custom_call.1}
  #allocation0 [shape = 'u32[]', space=smem, size = 0x4, offset = 0x4, fixed_abs, tag = 'smem constant byte address 0x4 - core index']
  #allocation1 [shape = 'u32[72,128]{1,0:T(1,128)}', space=vmem, size = 0x9000, scoped, tag = 'internal scratch']
  %s0 = inlined_call_operand.vmem [shape: s32[64,1], index: 0, kind: input, shape index: {}]
  %s1 = inlined_call_operand.vmem [shape: s32[64,1], index: 1, kind: input, shape index: {}]
  %s2 = inlined_call_operand.vmem [shape: f32[64,32], index: 2, kind: input, shape index: {}]
  %s3 = inlined_call_operand.vmem [shape: f32[16,32], index: 3, kind: input, shape index: {}]
  %s4 = inlined_call_operand.vmem [shape: f32[64,32], index: 4, kind: output, shape index: {}]
  %s5 = sld [smem:[#allocation0]]
  $region26: #{tpu_custom_call.1} parent=0
    _
  %s7 = ssub.s32 1, %s5
  %s8 = scalar_select 0, %s7, %s5
  // Predicated region
  $region2: #{tpu_custom_call.1} parent=0 // pred_check
    _
  $region3: #{tpu_custom_call.1} parent=0 // pred_check_branch
    %10 = sbr.rel (0) target = $region5
  $region4: #{tpu_custom_call.1} parent=0 // pred_region
    _
  $region5: #{tpu_custom_call.1} parent=0 // pred_fallthru
    _
  // Predicated region
  $region6: #{tpu_custom_call.1} parent=0 // pred_check
    _
  $region7: #{tpu_custom_call.1} parent=0 // pred_check_branch
    %12 = sbr.rel (0) target = $region9
  $region8: #{tpu_custom_call.1} parent=0 // pred_region
    _
  $region9: #{tpu_custom_call.1} parent=0 // pred_fallthru
    _
  // Predicated region
  $region10: #{tpu_custom_call.1} parent=0 // pred_check
    _
  $region11: #{tpu_custom_call.1} parent=0 // pred_check_branch
    %14 = sbr.rel (0) target = $region13
  $region12: #{tpu_custom_call.1} parent=0 // pred_region
    _
  $region13: #{tpu_custom_call.1} parent=0 // pred_fallthru
    _
  // Predicated region
  $region14: #{tpu_custom_call.1} parent=0 // pred_check
    _
  $region15: #{tpu_custom_call.1} parent=0 // pred_check_branch
    %16 = sbr.rel (0) target = $region17
  $region16: #{tpu_custom_call.1} parent=0 // pred_region
    _
  $region17: #{tpu_custom_call.1} parent=0 // pred_fallthru
    _
  %v17 = vlaneseq
  %v18 = vand.u32 %v17, 127
  %v19 = vld [vmem:[%s0] sm:$0xff]
  %v20 = vld [vmem:[%s0 + $0x8] sm:$0xff]
  %v21 = vld [vmem:[%s0 + $0x10] sm:$0xff]
  %v22 = vld [vmem:[%s0 + $0x18] sm:$0xff]
  %v23 = vld [vmem:[%s0 + $0x20] sm:$0xff]
  %v24 = vld [vmem:[%s0 + $0x28] sm:$0xff]
  %v25 = vld [vmem:[%s0 + $0x30] sm:$0xff]
  %v26 = vld [vmem:[%s0 + $0x38] sm:$0xff]
  %27 = vset.pattern.permute.xlu0 0
  %28 = vperm.xlu0 %27, %v19
  %v29 = vpop.permute.xlu0 %28
  %30 = vset.pattern.permute.xlu0 0
  %31 = vperm.xlu0 %30, %v20
  %v32 = vpop.permute.xlu0 %31
  %33 = vset.pattern.permute.xlu0 0
  %34 = vperm.xlu0 %33, %v21
  %v35 = vpop.permute.xlu0 %34
  %36 = vset.pattern.permute.xlu0 0
  %37 = vperm.xlu0 %36, %v22
  %v38 = vpop.permute.xlu0 %37
  %39 = vset.pattern.permute.xlu0 0
  %40 = vperm.xlu0 %39, %v23
  %v41 = vpop.permute.xlu0 %40
  %42 = vset.pattern.permute.xlu0 0
  %43 = vperm.xlu0 %42, %v24
  %v44 = vpop.permute.xlu0 %43
  %45 = vset.pattern.permute.xlu0 0
  %46 = vperm.xlu0 %45, %v25
  %v47 = vpop.permute.xlu0 %46
  %48 = vset.pattern.permute.xlu0 0
  %49 = vperm.xlu0 %48, %v26
  %v50 = vpop.permute.xlu0 %49
  %vm51 = vcmp.eq.s32.totalorder %v18, %v29
  %vm52 = vcmp.eq.s32.totalorder %v18, %v32
  %vm53 = vcmp.eq.s32.totalorder %v18, %v35
  %vm54 = vcmp.eq.s32.totalorder %v18, %v38
  %vm55 = vcmp.eq.s32.totalorder %v18, %v41
  %vm56 = vcmp.eq.s32.totalorder %v18, %v44
  %vm57 = vcmp.eq.s32.totalorder %v18, %v47
  %vm58 = vcmp.eq.s32.totalorder %v18, %v50
  %v59 = vsel %vm51, 1, 0
  %v60 = vsel %vm52, 1, 0
  %v61 = vsel %vm53, 1, 0
  %v62 = vsel %vm54, 1, 0
  %v63 = vsel %vm55, 1, 0
  %v64 = vsel %vm56, 1, 0
  %v65 = vsel %vm57, 1, 0
  %v66 = vsel %vm58, 1, 0
  %v67 = vcvt.s32.f32 %v59
  %v68 = vcvt.s32.f32 %v60
  %v69 = vcvt.s32.f32 %v61
  %v70 = vcvt.s32.f32 %v62
  %v71 = vcvt.s32.f32 %v63
  %v72 = vcvt.s32.f32 %v64
  %v73 = vcvt.s32.f32 %v65
  %v74 = vcvt.s32.f32 %v66
  %v75 = vld [vmem:[%s1] sm:$0xff]
  %v76 = vld [vmem:[%s1 + $0x8] sm:$0xff]
  %v77 = vld [vmem:[%s1 + $0x10] sm:$0xff]
  %v78 = vld [vmem:[%s1 + $0x18] sm:$0xff]
  %v79 = vld [vmem:[%s1 + $0x20] sm:$0xff]
  %v80 = vld [vmem:[%s1 + $0x28] sm:$0xff]
  %v81 = vld [vmem:[%s1 + $0x30] sm:$0xff]
  %v82 = vld [vmem:[%s1 + $0x38] sm:$0xff]
  %83 = vset.pattern.permute.xlu0 0
  %84 = vperm.xlu0 %83, %v75
  %v85 = vpop.permute.xlu0 %84
  %86 = vset.pattern.permute.xlu0 0
  %87 = vperm.xlu0 %86, %v76
  %v88 = vpop.permute.xlu0 %87
  %89 = vset.pattern.permute.xlu0 0
  %90 = vperm.xlu0 %89, %v77
  %v91 = vpop.permute.xlu0 %90
  %92 = vset.pattern.permute.xlu0 0
  %93 = vperm.xlu0 %92, %v78
  %v94 = vpop.permute.xlu0 %93
  %95 = vset.pattern.permute.xlu0 0
  %96 = vperm.xlu0 %95, %v79
  %v97 = vpop.permute.xlu0 %96
  %98 = vset.pattern.permute.xlu0 0
  %99 = vperm.xlu0 %98, %v80
  %v100 = vpop.permute.xlu0 %99
  %101 = vset.pattern.permute.xlu0 0
  %102 = vperm.xlu0 %101, %v81
  %v103 = vpop.permute.xlu0 %102
  %104 = vset.pattern.permute.xlu0 0
  %105 = vperm.xlu0 %104, %v82
  %v106 = vpop.permute.xlu0 %105
  %vm107 = vcmp.eq.s32.totalorder %v18, %v85
  %vm108 = vcmp.eq.s32.totalorder %v18, %v88
  %vm109 = vcmp.eq.s32.totalorder %v18, %v91
  %vm110 = vcmp.eq.s32.totalorder %v18, %v94
  %vm111 = vcmp.eq.s32.totalorder %v18, %v97
  %vm112 = vcmp.eq.s32.totalorder %v18, %v100
  %vm113 = vcmp.eq.s32.totalorder %v18, %v103
  %vm114 = vcmp.eq.s32.totalorder %v18, %v106
  %v115 = vsel %vm107, 1, 0
  %v116 = vsel %vm108, 1, 0
  %v117 = vsel %vm109, 1, 0
  %v118 = vsel %vm110, 1, 0
  %v119 = vsel %vm111, 1, 0
  %v120 = vsel %vm112, 1, 0
  %v121 = vsel %vm113, 1, 0
  %v122 = vsel %vm114, 1, 0
  %v123 = vcvt.s32.f32 %v115
  %v124 = vcvt.s32.f32 %v116
  %v125 = vcvt.s32.f32 %v117
  %v126 = vcvt.s32.f32 %v118
  %v127 = vcvt.s32.f32 %v119
  %v128 = vcvt.s32.f32 %v120
  %v129 = vcvt.s32.f32 %v121
  %v130 = vcvt.s32.f32 %v122
  %v131 = vadd.f32 %v67, %v123
  %v132 = vadd.f32 %v68, %v124
  %v133 = vadd.f32 %v69, %v125
  %v134 = vadd.f32 %v70, %v126
  %v135 = vadd.f32 %v71, %v127
  %v136 = vadd.f32 %v72, %v128
  %v137 = vadd.f32 %v73, %v129
  %v138 = vadd.f32 %v74, %v130
  %v139 = vld [vmem:[%s3] sm:$0xff]
  %v140 = vld [vmem:[%s3 + $0x8] sm:$0xff]
  %v141 = vld [vmem:[%s2] sm:$0xff]
  %v142 = vld [vmem:[%s2 + $0x8] sm:$0xff]
  %v143 = vld [vmem:[%s2 + $0x10] sm:$0xff]
  %v144 = vld [vmem:[%s2 + $0x18] sm:$0xff]
  %v145 = vld [vmem:[%s2 + $0x20] sm:$0xff]
  %v146 = vld [vmem:[%s2 + $0x28] sm:$0xff]
  %v147 = vld [vmem:[%s2 + $0x30] sm:$0xff]
  %v148 = vld [vmem:[%s2 + $0x38] sm:$0xff]
  %vm149 = vcmask 130048
  %v151 = vsel %vm149, %v131, 0
  %v154 = vsel %vm149, %v132, 0
  %v157 = vsel %vm149, %v133, 0
  %v160 = vsel %vm149, %v134, 0
  %v163 = vsel %vm149, %v135, 0
  %v166 = vsel %vm149, %v136, 0
  %v169 = vsel %vm149, %v137, 0
  %v172 = vsel %vm149, %v138, 0
  %174 = vmatpush.msra.mxu0 0.0
  %175 = vmatpush.msra.mxu0 0.0
  %176 = vmatpush.msra.mxu0 0.0
  %177 = vmatpush.msra.mxu0 0.0
  %178 = vmatpush.msra.mxu0 0.0
  %179 = vmatpush.msra.mxu0 0.0
  %180 = vmatpush.msra.mxu0 0.0
  %181 = vmatpush.msra.mxu0 0.0
  %182 = vmatpush.msra.mxu0 0.0
  %183 = vmatpush.msra.mxu0 0.0
  %184 = vmatpush.msra.mxu0 0.0
  %185 = vmatpush.msra.mxu0 0.0
  %186 = vmatpush.msra.mxu0 0.0
  %187 = vmatpush.msra.mxu0 0.0
  %188 = vmatpush.msra.mxu0 %v140
  %189 = vmatpush.msra.mxu0 %v139
  %190 = vmatmul.f32.gmra.mxu0 %v151
  %v191 = vpop.f32.mrf.mxu0
  %v192 = vadd.f32 %v141, %v191
  %193 = vmatmul.f32.gmra.mxu0 %v154
  %v194 = vpop.f32.mrf.mxu0
  %v195 = vadd.f32 %v142, %v194
  %196 = vmatmul.f32.gmra.mxu0 %v157
  %v197 = vpop.f32.mrf.mxu0
  %v198 = vadd.f32 %v143, %v197
  %199 = vmatmul.f32.gmra.mxu0 %v160
  %v200 = vpop.f32.mrf.mxu0
  %v201 = vadd.f32 %v144, %v200
  %202 = vmatmul.f32.gmra.mxu0 %v163
  %v203 = vpop.f32.mrf.mxu0
  %v204 = vadd.f32 %v145, %v203
  %205 = vmatmul.f32.gmra.mxu0 %v166
  %v206 = vpop.f32.mrf.mxu0
  %v207 = vadd.f32 %v146, %v206
  %208 = vmatmul.f32.gmra.mxu0 %v169
  %v209 = vpop.f32.mrf.mxu0
  %v210 = vadd.f32 %v147, %v209
  %211 = vmatmul.f32.gmra.mxu0 %v172
  %v212 = vpop.f32.mrf.mxu0
  %v213 = vadd.f32 %v148, %v212
  %214 = vdwg.mxu0
  %vm215 = vcmask 261120
  %216 = vst.msk [vmem:[%s4] sm:$0xff] %vm215, %v192
  %217 = vst.msk [vmem:[%s4 + $0x8] sm:$0xff] %vm215, %v195
  %218 = vst.msk [vmem:[%s4 + $0x10] sm:$0xff] %vm215, %v198
  %219 = vst.msk [vmem:[%s4 + $0x18] sm:$0xff] %vm215, %v201
  %220 = vst.msk [vmem:[%s4 + $0x20] sm:$0xff] %vm215, %v204
  %221 = vst.msk [vmem:[%s4 + $0x28] sm:$0xff] %vm215, %v207
  %222 = vst.msk [vmem:[%s4 + $0x30] sm:$0xff] %vm215, %v210
  %223 = vst.msk [vmem:[%s4 + $0x38] sm:$0xff] %vm215, %v213
  // Predicated region
  $region18: #{tpu_custom_call.1} parent=0 // pred_check
    _
  $region19: #{tpu_custom_call.1} parent=0 // pred_check_branch
    %225 = sbr.rel (0) target = $region21
  $region20: #{tpu_custom_call.1} parent=0 // pred_region
    _
  $region21: #{tpu_custom_call.1} parent=0 // pred_fallthru
    _
  // Predicated region
  $region22: #{tpu_custom_call.1} parent=0 // pred_check
    _
  $region23: #{tpu_custom_call.1} parent=0 // pred_check_branch
    %227 = sbr.rel (0) target = $region25
  $region24: #{tpu_custom_call.1} parent=0 // pred_region
    _
  $region25: #{tpu_custom_call.1} parent=0 // pred_fallthru
    _

</llo_original>
